<compile_context>
chip_gen: v5e
topology: v5e:2x2
jax: 0.10.0
libtpu: 0.0.40
codegen_flags: <defaults>
</compile_context>

<pallas_src>
import functools

import jax
import jax.numpy as jnp
from jax.experimental import pallas as pl
from jax.experimental.pallas import tpu as pltpu


def _lstm_svrg_kernel(x_ref, slab_ref, out_ref, *,
                      seq, batch, in_dim, hidden, f1, offs):
    H, B, D, F1 = hidden, batch, in_dim, f1

    # ---- Carve the packed parameter slab (static, aligned row/col slices) ----
    wih = slab_ref[offs["wih"]:offs["wih"] + D, 0:4 * H]   # (D, 4H)
    whh = slab_ref[offs["whh"]:offs["whh"] + H, 0:4 * H]   # (H, 4H)
    b   = slab_ref[offs["b"]:offs["b"] + 1, 0:4 * H]       # (1, 4H) = b_ih + b_hh
    w1  = slab_ref[offs["w1"]:offs["w1"] + H, 0:F1]        # (H, F1)
    b1  = slab_ref[offs["b1"]:offs["b1"] + 1, 0:F1]        # (1, F1)
    w2  = slab_ref[offs["w2"]:offs["w2"] + 1, 0:F1]        # (1, F1)
    b2  = slab_ref[offs["b2"]:offs["b2"] + 1, 0:1]         # (1, 1)

    # ---- Hoisted input projection for ALL timesteps (off the serial path) ----
    # x_ref: (seq*B, D) -> x_proj: (seq*B, 4H), fused LSTM bias folded in.
    x_proj = jnp.dot(x_ref[...], wih, preferred_element_type=jnp.float32) + b

    # ---- Serial LSTM recurrence, fully unrolled (seq is small & static) ----
    h = jnp.zeros((B, H), jnp.float32)   # initstrategy='zeros'
    c = jnp.zeros((B, H), jnp.float32)
    h_steps = []
    for t in range(seq):
        gates = x_proj[t * B:(t + 1) * B, :] + jnp.dot(
            h, whh, preferred_element_type=jnp.float32)     # (B, 4H)
        # PyTorch gate order i, f, g, o.
        # sigmoid(x) = 0.5*(1 + tanh(x/2)): 3 tanh EUP passes per step total.
        t_half = jnp.tanh(0.5 * gates)                       # EUP pass over 4H lanes
        g_g = jnp.tanh(gates[:, 2 * H:3 * H])                # EUP pass (g slice only)
        i_g = 0.5 * (1.0 + t_half[:, 0 * H:1 * H])
        f_g = 0.5 * (1.0 + t_half[:, 1 * H:2 * H])
        o_g = 0.5 * (1.0 + t_half[:, 3 * H:4 * H])
        c = f_g * c + i_g * g_g
        h = o_g * jnp.tanh(c)                                # third EUP pass
        h_steps.append(h)                                    # stays in vregs

    # ---- fc1 + relu, batched over all timesteps (one MXU matmul) ----
    hs = jnp.concatenate(h_steps, axis=0)                    # (seq*B, H)
    a1 = jnp.maximum(
        jnp.dot(hs, w1, preferred_element_type=jnp.float32) + b1, 0.0)

    # ---- fc2 (F1 -> 1) as a VPU lane reduction + relu; single output store ----
    z2 = jnp.sum(a1 * w2, axis=-1, keepdims=True) + b2       # (seq*B, 1)
    out_ref[...] = jnp.maximum(z2, 0.0)


def _pack_param_slab(named_arrays, width):
    """Row-stack 2D arrays, each padded to a multiple-of-8 row count and a
    common (multiple-of-128) lane width. Returns (slab, {name: row_offset})."""
    parts, offs, row = [], {}, 0
    for name, a in named_arrays:
        r, c = a.shape
        rp = -(-r // 8) * 8
        parts.append(jnp.pad(a.astype(jnp.float32),
                             ((0, rp - r), (0, width - c))))
        offs[name] = row
        row += rp
    return jnp.concatenate(parts, axis=0), offs


def lstm_svrg_forward(x, params):
    """x: (seq, batch, inputdim) float32. Returns (seq, batch, 1) float32."""
    seq, batch, in_dim = x.shape
    w_ih, w_hh = params["w_ih"], params["w_hh"]
    b_ih, b_hh = params["b_ih"], params["b_hh"]
    w1, b1, w2, b2 = params["w1"], params["b1"], params["w2"], params["b2"]
    hidden = w_hh.shape[1]
    f1 = w1.shape[0]

    # Wrapper-side (free) layout prep: time-major flatten + transposed weights,
    # then ONE packed parameter slab so the gridless call costs 2 entry DMAs.
    x2 = x.reshape(seq * batch, in_dim)
    width = -(-max(4 * hidden, f1) // 128) * 128
    slab, offs = _pack_param_slab(
        [("wih", w_ih.T),                                  # (D, 4H)
         ("whh", w_hh.T),                                  # (H, 4H)
         ("b",   (b_ih + b_hh).reshape(1, 4 * hidden)),    # fused LSTM bias
         ("w1",  w1.T),                                    # (H, F1)
         ("b1",  b1.reshape(1, f1)),
         ("w2",  w2.reshape(1, f1)),                       # fc2 weight as a row
         ("b2",  b2.reshape(1, 1))],                       # fc2 bias scalar
        width)

    kernel = functools.partial(
        _lstm_svrg_kernel, seq=seq, batch=batch, in_dim=in_dim,
        hidden=hidden, f1=f1, offs=offs)

    flops = (2 * seq * batch * in_dim * 4 * hidden        # input projection
             + 2 * seq * batch * hidden * 4 * hidden      # recurrence matmuls
             + 2 * seq * batch * hidden * f1              # fc1
             + 2 * seq * batch * f1)                      # fc2 lane reduce
    transcendentals = seq * batch * 6 * hidden            # 3 tanh passes / step
    bytes_accessed = 4 * (x2.size + slab.size + seq * batch)

    vmem = pl.BlockSpec(memory_space=pltpu.MemorySpace.VMEM)

    out_flat = pl.pallas_call(
        kernel,
        out_shape=jax.ShapeDtypeStruct((seq * batch, 1), jnp.float32),
        in_specs=[vmem,    # x (seq*B, D)
                  vmem],   # packed parameter slab
        out_specs=vmem,
        cost_estimate=pl.CostEstimate(flops=flops,
                                      transcendentals=transcendentals,
                                      bytes_accessed=bytes_accessed),
    )(x2, slab)

    return out_flat.reshape(seq, batch, 1)


def lstm_svrg_reference(x, params):
    """Pure-JAX reference (lax.scan LSTM + fc1/fc2), PyTorch gate order i,f,g,o."""
    w_ih, w_hh, b_ih, b_hh = params["w_ih"], params["w_hh"], params["b_ih"], params["b_hh"]
    w1, b1, w2, b2 = params["w1"], params["b1"], params["w2"], params["b2"]
    hidden = w_hh.shape[1]
    batch = x.shape[1]

    def step(carry, x_t):
        h, c = carry
        gates = x_t @ w_ih.T + h @ w_hh.T + b_ih + b_hh
        i = jax.nn.sigmoid(gates[:, 0 * hidden:1 * hidden])
        f = jax.nn.sigmoid(gates[:, 1 * hidden:2 * hidden])
        g = jnp.tanh(gates[:, 2 * hidden:3 * hidden])
        o = jax.nn.sigmoid(gates[:, 3 * hidden:4 * hidden])
        c = f * c + i * g
        h = o * jnp.tanh(c)
        return (h, c), h

    init = (jnp.zeros((batch, hidden), jnp.float32),
            jnp.zeros((batch, hidden), jnp.float32))
    _, hs = jax.lax.scan(step, init, x)                 # (seq, batch, hidden)
    a1 = jax.nn.relu(hs @ w1.T + b1)
    return jax.nn.relu(a1 @ w2.T + b2)


def init_params(key, inputdim, hiddendim, pix):
    """Deterministic init, PyTorch-style U(-1/sqrt(fan), 1/sqrt(fan)) shapes."""
    f1 = (pix - 2) ** 2
    ks = jax.random.split(key, 8)
    s_lstm = 1.0 / jnp.sqrt(hiddendim)
    s_fc1 = 1.0 / jnp.sqrt(hiddendim)
    s_fc2 = 1.0 / jnp.sqrt(f1)
    u = lambda k, shape, s: jax.random.uniform(k, shape, jnp.float32, -s, s)
    return {
        "w_ih": u(ks[0], (4 * hiddendim, inputdim), s_lstm),
        "w_hh": u(ks[1], (4 * hiddendim, hiddendim), s_lstm),
        "b_ih": u(ks[2], (4 * hiddendim,), s_lstm),
        "b_hh": u(ks[3], (4 * hiddendim,), s_lstm),
        "w1":   u(ks[4], (f1, hiddendim), s_fc1),
        "b1":   u(ks[5], (f1,), s_fc1),
        "w2":   u(ks[6], (1, f1), s_fc2),
        "b2":   u(ks[7], (1,), s_fc2),
    }


if __name__ == "__main__":
    # Small shapes consistent with the module's forward.
    inputdim, hiddendim, batchsize, seqsize, pix = 16, 32, 2, 8, 10

    key = jax.random.PRNGKey(0)
    pkey, xkey = jax.random.split(key)
    params = init_params(pkey, inputdim, hiddendim, pix)
    x = jax.random.normal(xkey, (seqsize, batchsize, inputdim), jnp.float32)

    out = jax.block_until_ready(lstm_svrg_forward(x, params))
    ref = jax.block_until_ready(lstm_svrg_reference(x, params))

    assert out.shape == (seqsize, batchsize, 1), out.shape
    assert jnp.allclose(out, ref, atol=1e-5, rtol=1e-5), float(jnp.abs(out - ref).max())

    print("KERNEL_OK")
</pallas_src>

<mosaic_0001>
module attributes {stable_mosaic.version = 11 : i64} {
  func.func @_lstm_svrg_kernel(%arg0: memref<16x16xf32, #tpu.memory_space<vmem>>, %arg1: memref<112x128xf32, #tpu.memory_space<vmem>>, %arg2: memref<16x1xf32, #tpu.memory_space<vmem>>) attributes {dimension_semantics = [], scalar_prefetch = 0 : i64, scratch_operands = 0 : i64, tpu.core_type = #tpu.core_type<tc>} {
    %c0 = arith.constant 0 : index
    %c0_0 = arith.constant 0 : index
    %0 = vector.load %arg1[%c0, %c0_0] : memref<112x128xf32, #tpu.memory_space<vmem>>, vector<16x128xf32>
    %c16 = arith.constant 16 : index
    %c0_1 = arith.constant 0 : index
    %1 = vector.load %arg1[%c16, %c0_1] : memref<112x128xf32, #tpu.memory_space<vmem>>, vector<32x128xf32>
    %c48 = arith.constant 48 : index
    %c0_2 = arith.constant 0 : index
    %2 = vector.load %arg1[%c48, %c0_2] : memref<112x128xf32, #tpu.memory_space<vmem>>, vector<1x128xf32>
    %c56 = arith.constant 56 : index
    %c0_3 = arith.constant 0 : index
    %3 = vector.load %arg1[%c56, %c0_3] : memref<112x128xf32, #tpu.memory_space<vmem>>, vector<32x64xf32>
    %c88 = arith.constant 88 : index
    %c0_4 = arith.constant 0 : index
    %4 = vector.load %arg1[%c88, %c0_4] : memref<112x128xf32, #tpu.memory_space<vmem>>, vector<1x64xf32>
    %c96 = arith.constant 96 : index
    %c0_5 = arith.constant 0 : index
    %5 = vector.load %arg1[%c96, %c0_5] : memref<112x128xf32, #tpu.memory_space<vmem>>, vector<1x64xf32>
    %c104 = arith.constant 104 : index
    %c0_6 = arith.constant 0 : index
    %6 = vector.load %arg1[%c104, %c0_6] : memref<112x128xf32, #tpu.memory_space<vmem>>, vector<1x1xf32>
    %c0_7 = arith.constant 0 : index
    %c0_8 = arith.constant 0 : index
    %7 = vector.load %arg0[%c0_7, %c0_8] : memref<16x16xf32, #tpu.memory_space<vmem>>, vector<16x16xf32>
    %cst = arith.constant dense<0.000000e+00> : vector<16x128xf32>
    %8 = tpu.matmul %7, %0, %cst {dimension_numbers = #tpu.dot_dimension_numbers<[1], [0], [0], [1], [0, 0, 1, 1], [], []>} : vector<16x16xf32>, vector<16x128xf32>, vector<16x128xf32> -> vector<16x128xf32>
    %9 = vector.broadcast %2 : vector<1x128xf32> to vector<16x128xf32>
    %10 = arith.addf %8, %9 : vector<16x128xf32>
    %cst_9 = arith.constant 0.000000e+00 : f32
    %11 = vector.broadcast %cst_9 : f32 to vector<2x32xf32>
    %cst_10 = arith.constant 0.000000e+00 : f32
    %12 = vector.broadcast %cst_10 : f32 to vector<2x32xf32>
    %13 = vector.extract_strided_slice %10 {offsets = [0, 0], sizes = [2, 128], strides = [1, 1]} : vector<16x128xf32> to vector<2x128xf32>
    %cst_11 = arith.constant dense<0.000000e+00> : vector<2x128xf32>
    %14 = tpu.matmul %11, %1, %cst_11 {dimension_numbers = #tpu.dot_dimension_numbers<[1], [0], [0], [1], [0, 0, 1, 1], [], []>} : vector<2x32xf32>, vector<32x128xf32>, vector<2x128xf32> -> vector<2x128xf32>
    %15 = arith.addf %13, %14 : vector<2x128xf32>
    %cst_12 = arith.constant 5.000000e-01 : f32
    %16 = vector.broadcast %cst_12 : f32 to vector<2x128xf32>
    %17 = arith.mulf %16, %15 : vector<2x128xf32>
    %18 = math.tanh %17 : vector<2x128xf32>
    %19 = vector.extract_strided_slice %15 {offsets = [0, 64], sizes = [2, 32], strides = [1, 1]} : vector<2x128xf32> to vector<2x32xf32>
    %20 = math.tanh %19 : vector<2x32xf32>
    %21 = vector.extract_strided_slice %18 {offsets = [0, 0], sizes = [2, 32], strides = [1, 1]} : vector<2x128xf32> to vector<2x32xf32>
    %cst_13 = arith.constant 1.000000e+00 : f32
    %22 = vector.broadcast %cst_13 : f32 to vector<2x32xf32>
    %23 = arith.addf %22, %21 : vector<2x32xf32>
    %cst_14 = arith.constant 5.000000e-01 : f32
    %24 = vector.broadcast %cst_14 : f32 to vector<2x32xf32>
    %25 = arith.mulf %24, %23 : vector<2x32xf32>
    %26 = vector.extract_strided_slice %18 {offsets = [0, 32], sizes = [2, 32], strides = [1, 1]} : vector<2x128xf32> to vector<2x32xf32>
    %cst_15 = arith.constant 1.000000e+00 : f32
    %27 = vector.broadcast %cst_15 : f32 to vector<2x32xf32>
    %28 = arith.addf %27, %26 : vector<2x32xf32>
    %cst_16 = arith.constant 5.000000e-01 : f32
    %29 = vector.broadcast %cst_16 : f32 to vector<2x32xf32>
    %30 = arith.mulf %29, %28 : vector<2x32xf32>
    %31 = vector.extract_strided_slice %18 {offsets = [0, 96], sizes = [2, 32], strides = [1, 1]} : vector<2x128xf32> to vector<2x32xf32>
    %cst_17 = arith.constant 1.000000e+00 : f32
    %32 = vector.broadcast %cst_17 : f32 to vector<2x32xf32>
    %33 = arith.addf %32, %31 : vector<2x32xf32>
    %cst_18 = arith.constant 5.000000e-01 : f32
    %34 = vector.broadcast %cst_18 : f32 to vector<2x32xf32>
    %35 = arith.mulf %34, %33 : vector<2x32xf32>
    %36 = arith.mulf %30, %12 : vector<2x32xf32>
    %37 = arith.mulf %25, %20 : vector<2x32xf32>
    %38 = arith.addf %36, %37 : vector<2x32xf32>
    %39 = math.tanh %38 : vector<2x32xf32>
    %40 = arith.mulf %35, %39 : vector<2x32xf32>
    %41 = vector.extract_strided_slice %10 {offsets = [2, 0], sizes = [2, 128], strides = [1, 1]} : vector<16x128xf32> to vector<2x128xf32>
    %cst_19 = arith.constant dense<0.000000e+00> : vector<2x128xf32>
    %42 = tpu.matmul %40, %1, %cst_19 {dimension_numbers = #tpu.dot_dimension_numbers<[1], [0], [0], [1], [0, 0, 1, 1], [], []>} : vector<2x32xf32>, vector<32x128xf32>, vector<2x128xf32> -> vector<2x128xf32>
    %43 = arith.addf %41, %42 : vector<2x128xf32>
    %cst_20 = arith.constant 5.000000e-01 : f32
    %44 = vector.broadcast %cst_20 : f32 to vector<2x128xf32>
    %45 = arith.mulf %44, %43 : vector<2x128xf32>
    %46 = math.tanh %45 : vector<2x128xf32>
    %47 = vector.extract_strided_slice %43 {offsets = [0, 64], sizes = [2, 32], strides = [1, 1]} : vector<2x128xf32> to vector<2x32xf32>
    %48 = math.tanh %47 : vector<2x32xf32>
    %49 = vector.extract_strided_slice %46 {offsets = [0, 0], sizes = [2, 32], strides = [1, 1]} : vector<2x128xf32> to vector<2x32xf32>
    %cst_21 = arith.constant 1.000000e+00 : f32
    %50 = vector.broadcast %cst_21 : f32 to vector<2x32xf32>
    %51 = arith.addf %50, %49 : vector<2x32xf32>
    %cst_22 = arith.constant 5.000000e-01 : f32
    %52 = vector.broadcast %cst_22 : f32 to vector<2x32xf32>
    %53 = arith.mulf %52, %51 : vector<2x32xf32>
    %54 = vector.extract_strided_slice %46 {offsets = [0, 32], sizes = [2, 32], strides = [1, 1]} : vector<2x128xf32> to vector<2x32xf32>
    %cst_23 = arith.constant 1.000000e+00 : f32
    %55 = vector.broadcast %cst_23 : f32 to vector<2x32xf32>
    %56 = arith.addf %55, %54 : vector<2x32xf32>
    %cst_24 = arith.constant 5.000000e-01 : f32
    %57 = vector.broadcast %cst_24 : f32 to vector<2x32xf32>
    %58 = arith.mulf %57, %56 : vector<2x32xf32>
    %59 = vector.extract_strided_slice %46 {offsets = [0, 96], sizes = [2, 32], strides = [1, 1]} : vector<2x128xf32> to vector<2x32xf32>
    %cst_25 = arith.constant 1.000000e+00 : f32
    %60 = vector.broadcast %cst_25 : f32 to vector<2x32xf32>
    %61 = arith.addf %60, %59 : vector<2x32xf32>
    %cst_26 = arith.constant 5.000000e-01 : f32
    %62 = vector.broadcast %cst_26 : f32 to vector<2x32xf32>
    %63 = arith.mulf %62, %61 : vector<2x32xf32>
    %64 = arith.mulf %58, %38 : vector<2x32xf32>
    %65 = arith.mulf %53, %48 : vector<2x32xf32>
    %66 = arith.addf %64, %65 : vector<2x32xf32>
    %67 = math.tanh %66 : vector<2x32xf32>
    %68 = arith.mulf %63, %67 : vector<2x32xf32>
    %69 = vector.extract_strided_slice %10 {offsets = [4, 0], sizes = [2, 128], strides = [1, 1]} : vector<16x128xf32> to vector<2x128xf32>
    %cst_27 = arith.constant dense<0.000000e+00> : vector<2x128xf32>
    %70 = tpu.matmul %68, %1, %cst_27 {dimension_numbers = #tpu.dot_dimension_numbers<[1], [0], [0], [1], [0, 0, 1, 1], [], []>} : vector<2x32xf32>, vector<32x128xf32>, vector<2x128xf32> -> vector<2x128xf32>
    %71 = arith.addf %69, %70 : vector<2x128xf32>
    %cst_28 = arith.constant 5.000000e-01 : f32
    %72 = vector.broadcast %cst_28 : f32 to vector<2x128xf32>
    %73 = arith.mulf %72, %71 : vector<2x128xf32>
    %74 = math.tanh %73 : vector<2x128xf32>
    %75 = vector.extract_strided_slice %71 {offsets = [0, 64], sizes = [2, 32], strides = [1, 1]} : vector<2x128xf32> to vector<2x32xf32>
    %76 = math.tanh %75 : vector<2x32xf32>
    %77 = vector.extract_strided_slice %74 {offsets = [0, 0], sizes = [2, 32], strides = [1, 1]} : vector<2x128xf32> to vector<2x32xf32>
    %cst_29 = arith.constant 1.000000e+00 : f32
    %78 = vector.broadcast %cst_29 : f32 to vector<2x32xf32>
    %79 = arith.addf %78, %77 : vector<2x32xf32>
    %cst_30 = arith.constant 5.000000e-01 : f32
    %80 = vector.broadcast %cst_30 : f32 to vector<2x32xf32>
    %81 = arith.mulf %80, %79 : vector<2x32xf32>
    %82 = vector.extract_strided_slice %74 {offsets = [0, 32], sizes = [2, 32], strides = [1, 1]} : vector<2x128xf32> to vector<2x32xf32>
    %cst_31 = arith.constant 1.000000e+00 : f32
    %83 = vector.broadcast %cst_31 : f32 to vector<2x32xf32>
    %84 = arith.addf %83, %82 : vector<2x32xf32>
    %cst_32 = arith.constant 5.000000e-01 : f32
    %85 = vector.broadcast %cst_32 : f32 to vector<2x32xf32>
    %86 = arith.mulf %85, %84 : vector<2x32xf32>
    %87 = vector.extract_strided_slice %74 {offsets = [0, 96], sizes = [2, 32], strides = [1, 1]} : vector<2x128xf32> to vector<2x32xf32>
    %cst_33 = arith.constant 1.000000e+00 : f32
    %88 = vector.broadcast %cst_33 : f32 to vector<2x32xf32>
    %89 = arith.addf %88, %87 : vector<2x32xf32>
    %cst_34 = arith.constant 5.000000e-01 : f32
    %90 = vector.broadcast %cst_34 : f32 to vector<2x32xf32>
    %91 = arith.mulf %90, %89 : vector<2x32xf32>
    %92 = arith.mulf %86, %66 : vector<2x32xf32>
    %93 = arith.mulf %81, %76 : vector<2x32xf32>
    %94 = arith.addf %92, %93 : vector<2x32xf32>
    %95 = math.tanh %94 : vector<2x32xf32>
    %96 = arith.mulf %91, %95 : vector<2x32xf32>
    %97 = vector.extract_strided_slice %10 {offsets = [6, 0], sizes = [2, 128], strides = [1, 1]} : vector<16x128xf32> to vector<2x128xf32>
    %cst_35 = arith.constant dense<0.000000e+00> : vector<2x128xf32>
    %98 = tpu.matmul %96, %1, %cst_35 {dimension_numbers = #tpu.dot_dimension_numbers<[1], [0], [0], [1], [0, 0, 1, 1], [], []>} : vector<2x32xf32>, vector<32x128xf32>, vector<2x128xf32> -> vector<2x128xf32>
    %99 = arith.addf %97, %98 : vector<2x128xf32>
    %cst_36 = arith.constant 5.000000e-01 : f32
    %100 = vector.broadcast %cst_36 : f32 to vector<2x128xf32>
    %101 = arith.mulf %100, %99 : vector<2x128xf32>
    %102 = math.tanh %101 : vector<2x128xf32>
    %103 = vector.extract_strided_slice %99 {offsets = [0, 64], sizes = [2, 32], strides = [1, 1]} : vector<2x128xf32> to vector<2x32xf32>
    %104 = math.tanh %103 : vector<2x32xf32>
    %105 = vector.extract_strided_slice %102 {offsets = [0, 0], sizes = [2, 32], strides = [1, 1]} : vector<2x128xf32> to vector<2x32xf32>
    %cst_37 = arith.constant 1.000000e+00 : f32
    %106 = vector.broadcast %cst_37 : f32 to vector<2x32xf32>
    %107 = arith.addf %106, %105 : vector<2x32xf32>
    %cst_38 = arith.constant 5.000000e-01 : f32
    %108 = vector.broadcast %cst_38 : f32 to vector<2x32xf32>
    %109 = arith.mulf %108, %107 : vector<2x32xf32>
    %110 = vector.extract_strided_slice %102 {offsets = [0, 32], sizes = [2, 32], strides = [1, 1]} : vector<2x128xf32> to vector<2x32xf32>
    %cst_39 = arith.constant 1.000000e+00 : f32
    %111 = vector.broadcast %cst_39 : f32 to vector<2x32xf32>
    %112 = arith.addf %111, %110 : vector<2x32xf32>
    %cst_40 = arith.constant 5.000000e-01 : f32
    %113 = vector.broadcast %cst_40 : f32 to vector<2x32xf32>
    %114 = arith.mulf %113, %112 : vector<2x32xf32>
    %115 = vector.extract_strided_slice %102 {offsets = [0, 96], sizes = [2, 32], strides = [1, 1]} : vector<2x128xf32> to vector<2x32xf32>
    %cst_41 = arith.constant 1.000000e+00 : f32
    %116 = vector.broadcast %cst_41 : f32 to vector<2x32xf32>
    %117 = arith.addf %116, %115 : vector<2x32xf32>
    %cst_42 = arith.constant 5.000000e-01 : f32
    %118 = vector.broadcast %cst_42 : f32 to vector<2x32xf32>
    %119 = arith.mulf %118, %117 : vector<2x32xf32>
    %120 = arith.mulf %114, %94 : vector<2x32xf32>
    %121 = arith.mulf %109, %104 : vector<2x32xf32>
    %122 = arith.addf %120, %121 : vector<2x32xf32>
    %123 = math.tanh %122 : vector<2x32xf32>
    %124 = arith.mulf %119, %123 : vector<2x32xf32>
    %125 = vector.extract_strided_slice %10 {offsets = [8, 0], sizes = [2, 128], strides = [1, 1]} : vector<16x128xf32> to vector<2x128xf32>
    %cst_43 = arith.constant dense<0.000000e+00> : vector<2x128xf32>
    %126 = tpu.matmul %124, %1, %cst_43 {dimension_numbers = #tpu.dot_dimension_numbers<[1], [0], [0], [1], [0, 0, 1, 1], [], []>} : vector<2x32xf32>, vector<32x128xf32>, vector<2x128xf32> -> vector<2x128xf32>
    %127 = arith.addf %125, %126 : vector<2x128xf32>
    %cst_44 = arith.constant 5.000000e-01 : f32
    %128 = vector.broadcast %cst_44 : f32 to vector<2x128xf32>
    %129 = arith.mulf %128, %127 : vector<2x128xf32>
    %130 = math.tanh %129 : vector<2x128xf32>
    %131 = vector.extract_strided_slice %127 {offsets = [0, 64], sizes = [2, 32], strides = [1, 1]} : vector<2x128xf32> to vector<2x32xf32>
    %132 = math.tanh %131 : vector<2x32xf32>
    %133 = vector.extract_strided_slice %130 {offsets = [0, 0], sizes = [2, 32], strides = [1, 1]} : vector<2x128xf32> to vector<2x32xf32>
    %cst_45 = arith.constant 1.000000e+00 : f32
    %134 = vector.broadcast %cst_45 : f32 to vector<2x32xf32>
    %135 = arith.addf %134, %133 : vector<2x32xf32>
    %cst_46 = arith.constant 5.000000e-01 : f32
    %136 = vector.broadcast %cst_46 : f32 to vector<2x32xf32>
    %137 = arith.mulf %136, %135 : vector<2x32xf32>
    %138 = vector.extract_strided_slice %130 {offsets = [0, 32], sizes = [2, 32], strides = [1, 1]} : vector<2x128xf32> to vector<2x32xf32>
    %cst_47 = arith.constant 1.000000e+00 : f32
    %139 = vector.broadcast %cst_47 : f32 to vector<2x32xf32>
    %140 = arith.addf %139, %138 : vector<2x32xf32>
    %cst_48 = arith.constant 5.000000e-01 : f32
    %141 = vector.broadcast %cst_48 : f32 to vector<2x32xf32>
    %142 = arith.mulf %141, %140 : vector<2x32xf32>
    %143 = vector.extract_strided_slice %130 {offsets = [0, 96], sizes = [2, 32], strides = [1, 1]} : vector<2x128xf32> to vector<2x32xf32>
    %cst_49 = arith.constant 1.000000e+00 : f32
    %144 = vector.broadcast %cst_49 : f32 to vector<2x32xf32>
    %145 = arith.addf %144, %143 : vector<2x32xf32>
    %cst_50 = arith.constant 5.000000e-01 : f32
    %146 = vector.broadcast %cst_50 : f32 to vector<2x32xf32>
    %147 = arith.mulf %146, %145 : vector<2x32xf32>
    %148 = arith.mulf %142, %122 : vector<2x32xf32>
    %149 = arith.mulf %137, %132 : vector<2x32xf32>
    %150 = arith.addf %148, %149 : vector<2x32xf32>
    %151 = math.tanh %150 : vector<2x32xf32>
    %152 = arith.mulf %147, %151 : vector<2x32xf32>
    %153 = vector.extract_strided_slice %10 {offsets = [10, 0], sizes = [2, 128], strides = [1, 1]} : vector<16x128xf32> to vector<2x128xf32>
    %cst_51 = arith.constant dense<0.000000e+00> : vector<2x128xf32>
    %154 = tpu.matmul %152, %1, %cst_51 {dimension_numbers = #tpu.dot_dimension_numbers<[1], [0], [0], [1], [0, 0, 1, 1], [], []>} : vector<2x32xf32>, vector<32x128xf32>, vector<2x128xf32> -> vector<2x128xf32>
    %155 = arith.addf %153, %154 : vector<2x128xf32>
    %cst_52 = arith.constant 5.000000e-01 : f32
    %156 = vector.broadcast %cst_52 : f32 to vector<2x128xf32>
    %157 = arith.mulf %156, %155 : vector<2x128xf32>
    %158 = math.tanh %157 : vector<2x128xf32>
    %159 = vector.extract_strided_slice %155 {offsets = [0, 64], sizes = [2, 32], strides = [1, 1]} : vector<2x128xf32> to vector<2x32xf32>
    %160 = math.tanh %159 : vector<2x32xf32>
    %161 = vector.extract_strided_slice %158 {offsets = [0, 0], sizes = [2, 32], strides = [1, 1]} : vector<2x128xf32> to vector<2x32xf32>
    %cst_53 = arith.constant 1.000000e+00 : f32
    %162 = vector.broadcast %cst_53 : f32 to vector<2x32xf32>
    %163 = arith.addf %162, %161 : vector<2x32xf32>
    %cst_54 = arith.constant 5.000000e-01 : f32
    %164 = vector.broadcast %cst_54 : f32 to vector<2x32xf32>
    %165 = arith.mulf %164, %163 : vector<2x32xf32>
    %166 = vector.extract_strided_slice %158 {offsets = [0, 32], sizes = [2, 32], strides = [1, 1]} : vector<2x128xf32> to vector<2x32xf32>
    %cst_55 = arith.constant 1.000000e+00 : f32
    %167 = vector.broadcast %cst_55 : f32 to vector<2x32xf32>
    %168 = arith.addf %167, %166 : vector<2x32xf32>
    %cst_56 = arith.constant 5.000000e-01 : f32
    %169 = vector.broadcast %cst_56 : f32 to vector<2x32xf32>
    %170 = arith.mulf %169, %168 : vector<2x32xf32>
    %171 = vector.extract_strided_slice %158 {offsets = [0, 96], sizes = [2, 32], strides = [1, 1]} : vector<2x128xf32> to vector<2x32xf32>
    %cst_57 = arith.constant 1.000000e+00 : f32
    %172 = vector.broadcast %cst_57 : f32 to vector<2x32xf32>
    %173 = arith.addf %172, %171 : vector<2x32xf32>
    %cst_58 = arith.constant 5.000000e-01 : f32
    %174 = vector.broadcast %cst_58 : f32 to vector<2x32xf32>
    %175 = arith.mulf %174, %173 : vector<2x32xf32>
    %176 = arith.mulf %170, %150 : vector<2x32xf32>
    %177 = arith.mulf %165, %160 : vector<2x32xf32>
    %178 = arith.addf %176, %177 : vector<2x32xf32>
    %179 = math.tanh %178 : vector<2x32xf32>
    %180 = arith.mulf %175, %179 : vector<2x32xf32>
    %181 = vector.extract_strided_slice %10 {offsets = [12, 0], sizes = [2, 128], strides = [1, 1]} : vector<16x128xf32> to vector<2x128xf32>
    %cst_59 = arith.constant dense<0.000000e+00> : vector<2x128xf32>
    %182 = tpu.matmul %180, %1, %cst_59 {dimension_numbers = #tpu.dot_dimension_numbers<[1], [0], [0], [1], [0, 0, 1, 1], [], []>} : vector<2x32xf32>, vector<32x128xf32>, vector<2x128xf32> -> vector<2x128xf32>
    %183 = arith.addf %181, %182 : vector<2x128xf32>
    %cst_60 = arith.constant 5.000000e-01 : f32
    %184 = vector.broadcast %cst_60 : f32 to vector<2x128xf32>
    %185 = arith.mulf %184, %183 : vector<2x128xf32>
    %186 = math.tanh %185 : vector<2x128xf32>
    %187 = vector.extract_strided_slice %183 {offsets = [0, 64], sizes = [2, 32], strides = [1, 1]} : vector<2x128xf32> to vector<2x32xf32>
    %188 = math.tanh %187 : vector<2x32xf32>
    %189 = vector.extract_strided_slice %186 {offsets = [0, 0], sizes = [2, 32], strides = [1, 1]} : vector<2x128xf32> to vector<2x32xf32>
    %cst_61 = arith.constant 1.000000e+00 : f32
    %190 = vector.broadcast %cst_61 : f32 to vector<2x32xf32>
    %191 = arith.addf %190, %189 : vector<2x32xf32>
    %cst_62 = arith.constant 5.000000e-01 : f32
    %192 = vector.broadcast %cst_62 : f32 to vector<2x32xf32>
    %193 = arith.mulf %192, %191 : vector<2x32xf32>
    %194 = vector.extract_strided_slice %186 {offsets = [0, 32], sizes = [2, 32], strides = [1, 1]} : vector<2x128xf32> to vector<2x32xf32>
    %cst_63 = arith.constant 1.000000e+00 : f32
    %195 = vector.broadcast %cst_63 : f32 to vector<2x32xf32>
    %196 = arith.addf %195, %194 : vector<2x32xf32>
    %cst_64 = arith.constant 5.000000e-01 : f32
    %197 = vector.broadcast %cst_64 : f32 to vector<2x32xf32>
    %198 = arith.mulf %197, %196 : vector<2x32xf32>
    %199 = vector.extract_strided_slice %186 {offsets = [0, 96], sizes = [2, 32], strides = [1, 1]} : vector<2x128xf32> to vector<2x32xf32>
    %cst_65 = arith.constant 1.000000e+00 : f32
    %200 = vector.broadcast %cst_65 : f32 to vector<2x32xf32>
    %201 = arith.addf %200, %199 : vector<2x32xf32>
    %cst_66 = arith.constant 5.000000e-01 : f32
    %202 = vector.broadcast %cst_66 : f32 to vector<2x32xf32>
    %203 = arith.mulf %202, %201 : vector<2x32xf32>
    %204 = arith.mulf %198, %178 : vector<2x32xf32>
    %205 = arith.mulf %193, %188 : vector<2x32xf32>
    %206 = arith.addf %204, %205 : vector<2x32xf32>
    %207 = math.tanh %206 : vector<2x32xf32>
    %208 = arith.mulf %203, %207 : vector<2x32xf32>
    %209 = vector.extract_strided_slice %10 {offsets = [14, 0], sizes = [2, 128], strides = [1, 1]} : vector<16x128xf32> to vector<2x128xf32>
    %cst_67 = arith.constant dense<0.000000e+00> : vector<2x128xf32>
    %210 = tpu.matmul %208, %1, %cst_67 {dimension_numbers = #tpu.dot_dimension_numbers<[1], [0], [0], [1], [0, 0, 1, 1], [], []>} : vector<2x32xf32>, vector<32x128xf32>, vector<2x128xf32> -> vector<2x128xf32>
    %211 = arith.addf %209, %210 : vector<2x128xf32>
    %cst_68 = arith.constant 5.000000e-01 : f32
    %212 = vector.broadcast %cst_68 : f32 to vector<2x128xf32>
    %213 = arith.mulf %212, %211 : vector<2x128xf32>
    %214 = math.tanh %213 : vector<2x128xf32>
    %215 = vector.extract_strided_slice %211 {offsets = [0, 64], sizes = [2, 32], strides = [1, 1]} : vector<2x128xf32> to vector<2x32xf32>
    %216 = math.tanh %215 : vector<2x32xf32>
    %217 = vector.extract_strided_slice %214 {offsets = [0, 0], sizes = [2, 32], strides = [1, 1]} : vector<2x128xf32> to vector<2x32xf32>
    %cst_69 = arith.constant 1.000000e+00 : f32
    %218 = vector.broadcast %cst_69 : f32 to vector<2x32xf32>
    %219 = arith.addf %218, %217 : vector<2x32xf32>
    %cst_70 = arith.constant 5.000000e-01 : f32
    %220 = vector.broadcast %cst_70 : f32 to vector<2x32xf32>
    %221 = arith.mulf %220, %219 : vector<2x32xf32>
    %222 = vector.extract_strided_slice %214 {offsets = [0, 32], sizes = [2, 32], strides = [1, 1]} : vector<2x128xf32> to vector<2x32xf32>
    %cst_71 = arith.constant 1.000000e+00 : f32
    %223 = vector.broadcast %cst_71 : f32 to vector<2x32xf32>
    %224 = arith.addf %223, %222 : vector<2x32xf32>
    %cst_72 = arith.constant 5.000000e-01 : f32
    %225 = vector.broadcast %cst_72 : f32 to vector<2x32xf32>
    %226 = arith.mulf %225, %224 : vector<2x32xf32>
    %227 = vector.extract_strided_slice %214 {offsets = [0, 96], sizes = [2, 32], strides = [1, 1]} : vector<2x128xf32> to vector<2x32xf32>
    %cst_73 = arith.constant 1.000000e+00 : f32
    %228 = vector.broadcast %cst_73 : f32 to vector<2x32xf32>
    %229 = arith.addf %228, %227 : vector<2x32xf32>
    %cst_74 = arith.constant 5.000000e-01 : f32
    %230 = vector.broadcast %cst_74 : f32 to vector<2x32xf32>
    %231 = arith.mulf %230, %229 : vector<2x32xf32>
    %232 = arith.mulf %226, %206 : vector<2x32xf32>
    %233 = arith.mulf %221, %216 : vector<2x32xf32>
    %234 = arith.addf %232, %233 : vector<2x32xf32>
    %235 = math.tanh %234 : vector<2x32xf32>
    %236 = arith.mulf %231, %235 : vector<2x32xf32>
    %237 = tpu.concatenate %40, %68, %96, %124, %152, %180, %208, %236 in 0 : vector<2x32xf32>, vector<2x32xf32>, vector<2x32xf32>, vector<2x32xf32>, vector<2x32xf32>, vector<2x32xf32>, vector<2x32xf32>, vector<2x32xf32> -> vector<16x32xf32>
    %cst_75 = arith.constant dense<0.000000e+00> : vector<16x64xf32>
    %238 = tpu.matmul %237, %3, %cst_75 {dimension_numbers = #tpu.dot_dimension_numbers<[1], [0], [0], [1], [0, 0, 1, 1], [], []>} : vector<16x32xf32>, vector<32x64xf32>, vector<16x64xf32> -> vector<16x64xf32>
    %239 = vector.broadcast %4 : vector<1x64xf32> to vector<16x64xf32>
    %240 = arith.addf %238, %239 : vector<16x64xf32>
    %cst_76 = arith.constant 0.000000e+00 : f32
    %241 = vector.broadcast %cst_76 : f32 to vector<16x64xf32>
    %242 = arith.maximumf %240, %241 : vector<16x64xf32>
    %243 = vector.broadcast %5 : vector<1x64xf32> to vector<16x64xf32>
    %244 = arith.mulf %242, %243 : vector<16x64xf32>
    %cst_77 = arith.constant dense<0.000000e+00> : vector<16xf32>
    %245 = vector.multi_reduction <add>, %244, %cst_77 [1] : vector<16x64xf32> to vector<16xf32>
    %246 = vector.shape_cast %245 : vector<16xf32> to vector<16x1xf32>
    %247 = vector.broadcast %6 : vector<1x1xf32> to vector<16x1xf32>
    %248 = arith.addf %246, %247 : vector<16x1xf32>
    %cst_78 = arith.constant 0.000000e+00 : f32
    %249 = vector.broadcast %cst_78 : f32 to vector<16x1xf32>
    %250 = arith.maximumf %248, %249 : vector<16x1xf32>
    %c0_79 = arith.constant 0 : index
    %c0_80 = arith.constant 0 : index
    %251 = vector.load %arg2[%c0_79, %c0_80] : memref<16x1xf32, #tpu.memory_space<vmem>>, vector<16x1xf32>
    tpu.vector_store %arg2[%c0_79, %c0_80], %250 {strides = array<i32>} : memref<16x1xf32, #tpu.memory_space<vmem>>, vector<16x1xf32>,
    return
  }
}

</mosaic_0001>

<llo_original>
// kernel: tpu_custom_call.1
$region0: #{tpu_custom_call.1}
  #allocation0 [shape = 'u32[]', space=smem, size = 0x4, offset = 0x4, fixed_abs, tag = 'smem constant byte address 0x4 - core index']
  #allocation1 [shape = 'u32[72,128]{1,0:T(1,128)}', space=vmem, size = 0x9000, scoped, tag = 'internal scratch']
  %s0 = inlined_call_operand.hbm [shape: f32[16,16], index: 0, kind: input, shape index: {}]
  %s1 = inlined_call_operand.hbm [shape: f32[112,128], index: 1, kind: input, shape index: {}]
  %s2 = inlined_call_operand.vmem [shape: f32[16,1], index: 2, kind: output, shape index: {}]
  %s3 = sld [smem:[#allocation0]]
  $region26: #{tpu_custom_call.1} parent=0
    _
  %s5 = ssub.s32 1, %s3
  %s6 = scalar_select 0, %s5, %s3
  $region1: #{tpu_custom_call.1} parent=0
    #allocation2 [shape = 'u8[8192]{0}', space=vmem, size = 0x2000, scoped, tag = 'input window, operand 0, single buffered']
    #allocation3 [shape = 's32[1]{0}', space=sflag, size = 0x4, scoped, tag = 'scoped memory for tpu_custom_call.1']
    #allocation4 [shape = 'u8[57344]{0}', space=vmem, size = 0xe000, scoped, tag = 'input window, operand 1, single buffered']
    #allocation5 [shape = 's32[1]{0}', space=sflag, size = 0x4, scoped, tag = 'scoped memory for tpu_custom_call.1']
    %7 = vsyncpa [#allocation3], 0
    %8 = vsyncpa [#allocation5], 0
    // Predicated region
    $region2: #{tpu_custom_call.1} parent=1 // pred_check
      _
    $region3: #{tpu_custom_call.1} parent=1 // pred_check_branch
      %10 = sbr.rel (0) target = $region5
    $region4: #{tpu_custom_call.1} parent=1 // pred_region
      %12 = vsyncadd [#allocation3], 0
      %s13 = sshll.u32 %s0, 4
      %s14 = int_to_ptr.hbm [resolvable:$true] %s13
      %s15 = sshll.u32 [#allocation2], 4
      %s16 = int_to_ptr.vmem [resolvable:$true] %s15
      %21 = dma.hbm_to_vmem [thread:$0]  %s14, 256, %s16, [#allocation3], 128, 128, 8
    $region5: #{tpu_custom_call.1} parent=1 // pred_fallthru
      _
    // Predicated region
    $region6: #{tpu_custom_call.1} parent=1 // pred_check
      _
    $region7: #{tpu_custom_call.1} parent=1 // pred_check_branch
      %23 = sbr.rel (0) target = $region9
    $region8: #{tpu_custom_call.1} parent=1 // pred_region
      %25 = vsyncadd [#allocation5], 0
      %s26 = sshll.u32 %s1, 4
      %s27 = int_to_ptr.hbm [resolvable:$true] %s26
      %s28 = sshll.u32 [#allocation4], 4
      %s29 = int_to_ptr.vmem [resolvable:$true] %s28
      %34 = dma.hbm_to_vmem [thread:$0]  %s27, 1792, %s29, [#allocation5], 128, 128, 8
    $region9: #{tpu_custom_call.1} parent=1 // pred_fallthru
      _
    // Predicated region
    $region10: #{tpu_custom_call.1} parent=1 // pred_check
      _
    $region11: #{tpu_custom_call.1} parent=1 // pred_check_branch
      %36 = sbr.rel (0) target = $region13
    $region12: #{tpu_custom_call.1} parent=1 // pred_region
      %38 = dma.done [#allocation3], 256
    $region13: #{tpu_custom_call.1} parent=1 // pred_fallthru
      _
    // Predicated region
    $region14: #{tpu_custom_call.1} parent=1 // pred_check
      _
    $region15: #{tpu_custom_call.1} parent=1 // pred_check_branch
      %40 = sbr.rel (0) target = $region17
    $region16: #{tpu_custom_call.1} parent=1 // pred_region
      %42 = dma.done [#allocation5], 1792
    $region17: #{tpu_custom_call.1} parent=1 // pred_fallthru
      _
    %v43 = vld [vmem:[#allocation4] sm:$0xff]
    %v44 = vld [vmem:[#allocation4 + $0x8] sm:$0xff]
    %v45 = vld [vmem:[#allocation4 + $0x10] sm:$0xff]
    %v46 = vld [vmem:[#allocation4 + $0x18] sm:$0xff]
    %v47 = vld [vmem:[#allocation4 + $0x20] sm:$0xff]
    %v48 = vld [vmem:[#allocation4 + $0x28] sm:$0xff]
    %v49 = vld [vmem:[#allocation4 + $0x30] sm:$0x1]
    %v50 = vld [vmem:[#allocation4 + $0x38] sm:$0xff]
    %v51 = vld [vmem:[#allocation4 + $0x40] sm:$0xff]
    %v52 = vld [vmem:[#allocation4 + $0x48] sm:$0xff]
    %v53 = vld [vmem:[#allocation4 + $0x50] sm:$0xff]
    %v54 = vld [vmem:[#allocation4 + $0x58] sm:$0x1]
    %v55 = vld [vmem:[#allocation4 + $0x60] sm:$0x1]
    %v56 = vld [vmem:[#allocation4 + $0x68] sm:$0x1]
    %v57 = vld [vmem:[#allocation2] sm:$0xff]
    %v58 = vld [vmem:[#allocation2 + $0x8] sm:$0xff]
    %v59 = vperm.slane %v49, 0
    %vm60 = vcmask 130048
    %v62 = vsel %vm60, %v57, 0
    %v65 = vsel %vm60, %v58, 0
    %67 = vmatpush.msra.mxu0 0.0
    %68 = vmatpush.msra.mxu0 0.0
    %69 = vmatpush.msra.mxu0 0.0
    %70 = vmatpush.msra.mxu0 0.0
    %71 = vmatpush.msra.mxu0 0.0
    %72 = vmatpush.msra.mxu0 0.0
    %73 = vmatpush.msra.mxu0 0.0
    %74 = vmatpush.msra.mxu0 0.0
    %75 = vmatpush.msra.mxu0 0.0
    %76 = vmatpush.msra.mxu0 0.0
    %77 = vmatpush.msra.mxu0 0.0
    %78 = vmatpush.msra.mxu0 0.0
    %79 = vmatpush.msra.mxu0 0.0
    %80 = vmatpush.msra.mxu0 0.0
    %81 = vmatpush.msra.mxu0 %v44
    %82 = vmatpush.msra.mxu0 %v43
    %83 = vmatmul.f32.gmra.mxu0 %v62
    %v84 = vpop.f32.mrf.mxu0
    %v85 = vadd.f32 %v59, %v84
    %86 = vmatmul.f32.gmra.mxu0 %v65
    %v87 = vpop.f32.mrf.mxu0
    %v88 = vadd.f32 %v59, %v87
    %89 = vdwg.mxu0
    %vm90 = vcmask 261120
    %v92 = vsel %vm90, 0.0, 0
    %94 = vmatpush.msra.mxu0 0.0
    %95 = vmatpush.msra.mxu0 0.0
    %96 = vmatpush.msra.mxu0 0.0
    %97 = vmatpush.msra.mxu0 0.0
    %98 = vmatpush.msra.mxu0 0.0
    %99 = vmatpush.msra.mxu0 0.0
    %100 = vmatpush.msra.mxu0 0.0
    %101 = vmatpush.msra.mxu0 0.0
    %102 = vmatpush.msra.mxu0 0.0
    %103 = vmatpush.msra.mxu0 0.0
    %104 = vmatpush.msra.mxu0 0.0
    %105 = vmatpush.msra.mxu0 0.0
    %106 = vmatpush.msra.mxu0 %v48
    %107 = vmatpush.msra.mxu0 %v47
    %108 = vmatpush.msra.mxu0 %v46
    %109 = vmatpush.msra.mxu0 %v45
    %110 = vmatmul.f32.gmra.mxu0 %v92
    %v111 = vpop.f32.mrf.mxu0
    %v112 = vadd.f32 0.0, %v111
    %113 = vdwg.mxu0
    %v114 = vadd.f32 %v85, %v112
    %v115 = vmul.f32 %v114, 0.5
    %v116 = vtanh.pop %v115
    %v117 = vtanh.pop %v114
    %v118 = vadd.f32 %v116, 1.0
    %v119 = vmul.f32 %v118, 0.5
    %v120 = vmul.f32 %v119, 0.0
    %122 = vrot.lane.b32.xlu0 %v117, 64
    %v123 = vpop.permute.xlu0 %122
    %v125 = vmul.f32 %v119, %v123
    %127 = vrot.lane.b32.xlu0 %v125, 32
    %v128 = vpop.permute.xlu0 %127
    %v130 = vadd.f32 %v120, %v128
    %v131 = vtanh.pop %v130
    %133 = vrot.lane.b32.xlu0 %v131, 64
    %v134 = vpop.permute.xlu0 %133
    %v136 = vmul.f32 %v119, %v134
    %138 = vrot.lane.b32.xlu0 %v136, 32
    %v139 = vpop.permute.xlu0 %138
    %v140 = vsel %vm90, %v139, 0
    %142 = vmatpush.msra.mxu0 0.0
    %143 = vmatpush.msra.mxu0 0.0
    %144 = vmatpush.msra.mxu0 0.0
    %145 = vmatpush.msra.mxu0 0.0
    %146 = vmatpush.msra.mxu0 0.0
    %147 = vmatpush.msra.mxu0 0.0
    %148 = vmatpush.msra.mxu0 0.0
    %149 = vmatpush.msra.mxu0 0.0
    %150 = vmatpush.msra.mxu0 0.0
    %151 = vmatpush.msra.mxu0 0.0
    %152 = vmatpush.msra.mxu0 0.0
    %153 = vmatpush.msra.mxu0 0.0
    %154 = vmatpush.msra.mxu0 %v48
    %155 = vmatpush.msra.mxu0 %v47
    %156 = vmatpush.msra.mxu0 %v46
    %157 = vmatpush.msra.mxu0 %v45
    %158 = vmatmul.f32.gmra.mxu0 %v140
    %v159 = vpop.f32.mrf.mxu0
    %v160 = vadd.f32 0.0, %v159
    %161 = vdwg.mxu0
    %v163 = vrot.slane %v160, 6
    %v165 = vadd.f32 %v85, %v163
    %v166 = vmul.f32 %v165, 0.5
    %v167 = vtanh.pop %v166
    %v168 = vtanh.pop %v165
    %v169 = vadd.f32 %v167, 1.0
    %v170 = vmul.f32 %v169, 0.5
    %v172 = vrot.slane %v130, 6
    %v174 = vmul.f32 %v170, %v172
    %176 = vrot.lane.b32.xlu0 %v168, 64
    %v177 = vpop.permute.xlu0 %176
    %v179 = vmul.f32 %v170, %v177
    %181 = vrot.lane.b32.xlu0 %v179, 32
    %v182 = vpop.permute.xlu0 %181
    %v184 = vadd.f32 %v174, %v182
    %v185 = vtanh.pop %v184
    %187 = vrot.lane.b32.xlu0 %v185, 64
    %v188 = vpop.permute.xlu0 %187
    %v190 = vmul.f32 %v170, %v188
    %v192 = vrot.slane %v190, 2
    %193 = vrot.lane.b32.xlu0 %v192, 32
    %v194 = vpop.permute.xlu0 %193
    %v195 = vsel %vm90, %v194, 0
    %197 = vmatpush.msra.mxu0 0.0
    %198 = vmatpush.msra.mxu0 0.0
    %199 = vmatpush.msra.mxu0 0.0
    %200 = vmatpush.msra.mxu0 0.0
    %201 = vmatpush.msra.mxu0 0.0
    %202 = vmatpush.msra.mxu0 0.0
    %203 = vmatpush.msra.mxu0 0.0
    %204 = vmatpush.msra.mxu0 0.0
    %205 = vmatpush.msra.mxu0 0.0
    %206 = vmatpush.msra.mxu0 0.0
    %207 = vmatpush.msra.mxu0 0.0
    %208 = vmatpush.msra.mxu0 0.0
    %209 = vmatpush.msra.mxu0 %v48
    %210 = vmatpush.msra.mxu0 %v47
    %211 = vmatpush.msra.mxu0 %v46
    %212 = vmatpush.msra.mxu0 %v45
    %213 = vmatmul.f32.gmra.mxu0 %v195
    %v214 = vpop.f32.mrf.mxu0
    %v215 = vadd.f32 0.0, %v214
    %216 = vdwg.mxu0
    %v218 = vrot.slane %v215, 4
    %v220 = vadd.f32 %v85, %v218
    %v221 = vmul.f32 %v220, 0.5
    %v222 = vtanh.pop %v221
    %v223 = vtanh.pop %v220
    %v224 = vadd.f32 %v222, 1.0
    %v225 = vmul.f32 %v224, 0.5
    %v227 = vrot.slane %v184, 6
    %v229 = vmul.f32 %v225, %v227
    %231 = vrot.lane.b32.xlu0 %v223, 64
    %v232 = vpop.permute.xlu0 %231
    %v234 = vmul.f32 %v225, %v232
    %236 = vrot.lane.b32.xlu0 %v234, 32
    %v237 = vpop.permute.xlu0 %236
    %v239 = vadd.f32 %v229, %v237
    %v240 = vtanh.pop %v239
    %242 = vrot.lane.b32.xlu0 %v240, 64
    %v243 = vpop.permute.xlu0 %242
    %v245 = vmul.f32 %v225, %v243
    %v247 = vrot.slane %v245, 4
    %248 = vrot.lane.b32.xlu0 %v247, 32
    %v249 = vpop.permute.xlu0 %248
    %v250 = vsel %vm90, %v249, 0
    %252 = vmatpush.msra.mxu0 0.0
    %253 = vmatpush.msra.mxu0 0.0
    %254 = vmatpush.msra.mxu0 0.0
    %255 = vmatpush.msra.mxu0 0.0
    %256 = vmatpush.msra.mxu0 0.0
    %257 = vmatpush.msra.mxu0 0.0
    %258 = vmatpush.msra.mxu0 0.0
    %259 = vmatpush.msra.mxu0 0.0
    %260 = vmatpush.msra.mxu0 0.0
    %261 = vmatpush.msra.mxu0 0.0
    %262 = vmatpush.msra.mxu0 0.0
    %263 = vmatpush.msra.mxu0 0.0
    %264 = vmatpush.msra.mxu0 %v48
    %265 = vmatpush.msra.mxu0 %v47
    %266 = vmatpush.msra.mxu0 %v46
    %267 = vmatpush.msra.mxu0 %v45
    %268 = vmatmul.f32.gmra.mxu0 %v250
    %v269 = vpop.f32.mrf.mxu0
    %v270 = vadd.f32 0.0, %v269
    %271 = vdwg.mxu0
    %v273 = vrot.slane %v270, 2
    %v275 = vadd.f32 %v85, %v273
    %v276 = vmul.f32 %v275, 0.5
    %v277 = vtanh.pop %v276
    %v278 = vtanh.pop %v275
    %v279 = vadd.f32 %v277, 1.0
    %v280 = vmul.f32 %v279, 0.5
    %v282 = vrot.slane %v239, 6
    %v284 = vmul.f32 %v280, %v282
    %286 = vrot.lane.b32.xlu0 %v278, 64
    %v287 = vpop.permute.xlu0 %286
    %v289 = vmul.f32 %v280, %v287
    %291 = vrot.lane.b32.xlu0 %v289, 32
    %v292 = vpop.permute.xlu0 %291
    %v294 = vadd.f32 %v284, %v292
    %v295 = vtanh.pop %v294
    %297 = vrot.lane.b32.xlu0 %v295, 64
    %v298 = vpop.permute.xlu0 %297
    %v300 = vmul.f32 %v280, %v298
    %v302 = vrot.slane %v300, 6
    %303 = vrot.lane.b32.xlu0 %v302, 32
    %v304 = vpop.permute.xlu0 %303
    %v305 = vsel %vm90, %v304, 0
    %307 = vmatpush.msra.mxu0 0.0
    %308 = vmatpush.msra.mxu0 0.0
    %309 = vmatpush.msra.mxu0 0.0
    %310 = vmatpush.msra.mxu0 0.0
    %311 = vmatpush.msra.mxu0 0.0
    %312 = vmatpush.msra.mxu0 0.0
    %313 = vmatpush.msra.mxu0 0.0
    %314 = vmatpush.msra.mxu0 0.0
    %315 = vmatpush.msra.mxu0 0.0
    %316 = vmatpush.msra.mxu0 0.0
    %317 = vmatpush.msra.mxu0 0.0
    %318 = vmatpush.msra.mxu0 0.0
    %319 = vmatpush.msra.mxu0 %v48
    %320 = vmatpush.msra.mxu0 %v47
    %321 = vmatpush.msra.mxu0 %v46
    %322 = vmatpush.msra.mxu0 %v45
    %323 = vmatmul.f32.gmra.mxu0 %v305
    %v324 = vpop.f32.mrf.mxu0
    %v325 = vadd.f32 0.0, %v324
    %326 = vdwg.mxu0
    %v327 = vadd.f32 %v88, %v325
    %v328 = vmul.f32 %v327, 0.5
    %v329 = vtanh.pop %v328
    %v330 = vtanh.pop %v327
    %v331 = vadd.f32 %v329, 1.0
    %v332 = vmul.f32 %v331, 0.5
    %v334 = vrot.slane %v294, 6
    %v336 = vmul.f32 %v332, %v334
    %338 = vrot.lane.b32.xlu0 %v330, 64
    %v339 = vpop.permute.xlu0 %338
    %v341 = vmul.f32 %v332, %v339
    %343 = vrot.lane.b32.xlu0 %v341, 32
    %v344 = vpop.permute.xlu0 %343
    %v346 = vadd.f32 %v336, %v344
    %v347 = vtanh.pop %v346
    %349 = vrot.lane.b32.xlu0 %v347, 64
    %v350 = vpop.permute.xlu0 %349
    %v352 = vmul.f32 %v332, %v350
    %354 = vrot.lane.b32.xlu0 %v352, 32
    %v355 = vpop.permute.xlu0 %354
    %v356 = vsel %vm90, %v355, 0
    %358 = vmatpush.msra.mxu0 0.0
    %359 = vmatpush.msra.mxu0 0.0
    %360 = vmatpush.msra.mxu0 0.0
    %361 = vmatpush.msra.mxu0 0.0
    %362 = vmatpush.msra.mxu0 0.0
    %363 = vmatpush.msra.mxu0 0.0
    %364 = vmatpush.msra.mxu0 0.0
    %365 = vmatpush.msra.mxu0 0.0
    %366 = vmatpush.msra.mxu0 0.0
    %367 = vmatpush.msra.mxu0 0.0
    %368 = vmatpush.msra.mxu0 0.0
    %369 = vmatpush.msra.mxu0 0.0
    %370 = vmatpush.msra.mxu0 %v48
    %371 = vmatpush.msra.mxu0 %v47
    %372 = vmatpush.msra.mxu0 %v46
    %373 = vmatpush.msra.mxu0 %v45
    %374 = vmatmul.f32.gmra.mxu0 %v356
    %v375 = vpop.f32.mrf.mxu0
    %v376 = vadd.f32 0.0, %v375
    %377 = vdwg.mxu0
    %v379 = vrot.slane %v376, 6
    %v381 = vadd.f32 %v88, %v379
    %v382 = vmul.f32 %v381, 0.5
    %v383 = vtanh.pop %v382
    %v384 = vtanh.pop %v381
    %v385 = vadd.f32 %v383, 1.0
    %v386 = vmul.f32 %v385, 0.5
    %v388 = vrot.slane %v346, 6
    %v390 = vmul.f32 %v386, %v388
    %392 = vrot.lane.b32.xlu0 %v384, 64
    %v393 = vpop.permute.xlu0 %392
    %v395 = vmul.f32 %v386, %v393
    %397 = vrot.lane.b32.xlu0 %v395, 32
    %v398 = vpop.permute.xlu0 %397
    %v400 = vadd.f32 %v390, %v398
    %v401 = vtanh.pop %v400
    %403 = vrot.lane.b32.xlu0 %v401, 64
    %v404 = vpop.permute.xlu0 %403
    %v406 = vmul.f32 %v386, %v404
    %v408 = vrot.slane %v406, 2
    %409 = vrot.lane.b32.xlu0 %v408, 32
    %v410 = vpop.permute.xlu0 %409
    %v411 = vsel %vm90, %v410, 0
    %413 = vmatpush.msra.mxu0 0.0
    %414 = vmatpush.msra.mxu0 0.0
    %415 = vmatpush.msra.mxu0 0.0
    %416 = vmatpush.msra.mxu0 0.0
    %417 = vmatpush.msra.mxu0 0.0
    %418 = vmatpush.msra.mxu0 0.0
    %419 = vmatpush.msra.mxu0 0.0
    %420 = vmatpush.msra.mxu0 0.0
    %421 = vmatpush.msra.mxu0 0.0
    %422 = vmatpush.msra.mxu0 0.0
    %423 = vmatpush.msra.mxu0 0.0
    %424 = vmatpush.msra.mxu0 0.0
    %425 = vmatpush.msra.mxu0 %v48
    %426 = vmatpush.msra.mxu0 %v47
    %427 = vmatpush.msra.mxu0 %v46
    %428 = vmatpush.msra.mxu0 %v45
    %429 = vmatmul.f32.gmra.mxu0 %v411
    %v430 = vpop.f32.mrf.mxu0
    %v431 = vadd.f32 0.0, %v430
    %432 = vdwg.mxu0
    %v434 = vrot.slane %v431, 4
    %v436 = vadd.f32 %v88, %v434
    %v437 = vmul.f32 %v436, 0.5
    %v438 = vtanh.pop %v437
    %v439 = vtanh.pop %v436
    %v440 = vadd.f32 %v438, 1.0
    %v441 = vmul.f32 %v440, 0.5
    %v443 = vrot.slane %v400, 6
    %v445 = vmul.f32 %v441, %v443
    %447 = vrot.lane.b32.xlu0 %v439, 64
    %v448 = vpop.permute.xlu0 %447
    %v450 = vmul.f32 %v441, %v448
    %452 = vrot.lane.b32.xlu0 %v450, 32
    %v453 = vpop.permute.xlu0 %452
    %v455 = vadd.f32 %v445, %v453
    %v456 = vtanh.pop %v455
    %458 = vrot.lane.b32.xlu0 %v456, 64
    %v459 = vpop.permute.xlu0 %458
    %v461 = vmul.f32 %v441, %v459
    %v463 = vrot.slane %v461, 4
    %464 = vrot.lane.b32.xlu0 %v463, 32
    %v465 = vpop.permute.xlu0 %464
    %v466 = vsel %vm90, %v465, 0
    %468 = vmatpush.msra.mxu0 0.0
    %469 = vmatpush.msra.mxu0 0.0
    %470 = vmatpush.msra.mxu0 0.0
    %471 = vmatpush.msra.mxu0 0.0
    %472 = vmatpush.msra.mxu0 0.0
    %473 = vmatpush.msra.mxu0 0.0
    %474 = vmatpush.msra.mxu0 0.0
    %475 = vmatpush.msra.mxu0 0.0
    %476 = vmatpush.msra.mxu0 0.0
    %477 = vmatpush.msra.mxu0 0.0
    %478 = vmatpush.msra.mxu0 0.0
    %479 = vmatpush.msra.mxu0 0.0
    %480 = vmatpush.msra.mxu0 %v48
    %481 = vmatpush.msra.mxu0 %v47
    %482 = vmatpush.msra.mxu0 %v46
    %483 = vmatpush.msra.mxu0 %v45
    %484 = vmatmul.f32.gmra.mxu0 %v466
    %v485 = vpop.f32.mrf.mxu0
    %v486 = vadd.f32 0.0, %v485
    %487 = vdwg.mxu0
    %v489 = vrot.slane %v486, 2
    %v491 = vadd.f32 %v88, %v489
    %v492 = vmul.f32 %v491, 0.5
    %v493 = vtanh.pop %v492
    %v494 = vtanh.pop %v491
    %v495 = vadd.f32 %v493, 1.0
    %v496 = vmul.f32 %v495, 0.5
    %v498 = vrot.slane %v455, 6
    %v500 = vmul.f32 %v496, %v498
    %502 = vrot.lane.b32.xlu0 %v494, 64
    %v503 = vpop.permute.xlu0 %502
    %v505 = vmul.f32 %v496, %v503
    %507 = vrot.lane.b32.xlu0 %v505, 32
    %v508 = vpop.permute.xlu0 %507
    %v510 = vadd.f32 %v500, %v508
    %v511 = vtanh.pop %v510
    %513 = vrot.lane.b32.xlu0 %v511, 64
    %v514 = vpop.permute.xlu0 %513
    %v516 = vmul.f32 %v496, %v514
    %vm517 = vcmask 1041408
    %v518 = vsel %vm517, %v136, %v190
    %vm519 = vcmask 1043456
    %v520 = vsel %vm519, %v518, %v245
    %vm521 = vcmask 1045504
    %v522 = vsel %vm521, %v520, %v300
    %v523 = vsel %vm517, %v352, %v406
    %v524 = vsel %vm519, %v523, %v461
    %v525 = vsel %vm521, %v524, %v516
    %v526 = vperm.slane %v54, 0
    %529 = vrot.lane.b32.xlu0 %v522, 32
    %v530 = vpop.permute.xlu0 %529
    %531 = vrot.lane.b32.xlu0 %v525, 32
    %v532 = vpop.permute.xlu0 %531
    %v533 = vsel %vm90, %v530, 0
    %v535 = vsel %vm90, %v532, 0
    %537 = vmatpush.msra.mxu0 0.0
    %538 = vmatpush.msra.mxu0 0.0
    %539 = vmatpush.msra.mxu0 0.0
    %540 = vmatpush.msra.mxu0 0.0
    %541 = vmatpush.msra.mxu0 0.0
    %542 = vmatpush.msra.mxu0 0.0
    %543 = vmatpush.msra.mxu0 0.0
    %544 = vmatpush.msra.mxu0 0.0
    %545 = vmatpush.msra.mxu0 0.0
    %546 = vmatpush.msra.mxu0 0.0
    %547 = vmatpush.msra.mxu0 0.0
    %548 = vmatpush.msra.mxu0 0.0
    %549 = vmatpush.msra.mxu0 %v53
    %550 = vmatpush.msra.mxu0 %v52
    %551 = vmatpush.msra.mxu0 %v51
    %552 = vmatpush.msra.mxu0 %v50
    %553 = vmatmul.f32.gmra.mxu0 %v533
    %v554 = vpop.f32.mrf.mxu0
    %v555 = vadd.f32 %v526, %v554
    %556 = vmatmul.f32.gmra.mxu0 %v535
    %v557 = vpop.f32.mrf.mxu0
    %v558 = vadd.f32 %v526, %v557
    %559 = vdwg.mxu0
    %v560 = vmax.f32 %v555, 0.0
    %v561 = vmax.f32 %v558, 0.0
    %v562 = vperm.slane %v55, 0
    %v563 = vmul.f32 %v560, %v562
    %v564 = vmul.f32 %v561, %v562
    %vm565 = vcmask 523264
    %v566 = vsel %vm565, %v563, 0.0
    %567 = vadd.xlane.f32.xlu0 %v566
    %v568 = vpop.xlane.xlu0 %567
    %v569 = vsel %vm565, %v564, 0.0
    %570 = vadd.xlane.f32.xlu0 %v569
    %v571 = vpop.xlane.xlu0 %570
    %v572 = vperm.slane %v56, 0
    %v573 = vadd.f32 %v568, %v572
    %v574 = vadd.f32 %v571, %v572
    %v575 = vmax.f32 %v573, 0.0
    %v576 = vmax.f32 %v574, 0.0
    %vm577 = vcmask 7168
    %578 = vst.msk [vmem:[%s2] sm:$0xff] %vm577, %v575
    %579 = vst.msk [vmem:[%s2 + $0x8] sm:$0xff] %vm577, %v576
    // Predicated region
    $region18: #{tpu_custom_call.1} parent=1 // pred_check
      _
    $region19: #{tpu_custom_call.1} parent=1 // pred_check_branch
      %581 = sbr.rel (0) target = $region21
    $region20: #{tpu_custom_call.1} parent=1 // pred_region
      _
    $region21: #{tpu_custom_call.1} parent=1 // pred_fallthru
      _
    // Predicated region
    $region22: #{tpu_custom_call.1} parent=1 // pred_check
      _
    $region23: #{tpu_custom_call.1} parent=1 // pred_check_branch
      %583 = sbr.rel (0) target = $region25
    $region24: #{tpu_custom_call.1} parent=1 // pred_region
      _
    $region25: #{tpu_custom_call.1} parent=1 // pred_fallthru
      _
    %584 = vsyncpa [#allocation3], 1
    %585 = vsyncpa [#allocation5], 1

</llo_original>
